<compile_context>
chip_gen: v5e
topology: v5e:2x2
jax: 0.10.0
libtpu: 0.0.40
codegen_flags: <defaults>
</compile_context>

<pallas_src>
import jax
import jax.numpy as jnp
from jax.experimental import pallas as pl
from jax.experimental.pallas import tpu as pltpu


def _res_stack_kernel(x_ref, w_ref, b_ref, o_ref, acc_ref):
    # x_ref: (C, T) lane-dense activation tile
    # w_ref: (1, C, C) weight of residual block r   (out_ch, in_ch)
    # b_ref: (1, C, 1) bias of residual block r
    # o_ref: (C, T) output tile (same lane tile as x_ref, revisited across r)
    # acc_ref: (C, T) f32 running activation, persists across the r axis
    r = pl.program_id(1)

    @pl.when(r == 0)
    def _init():
        acc_ref[...] = x_ref[...].astype(jnp.float32)

    h = acc_ref[...]
    y = jnp.dot(w_ref[0], h, preferred_element_type=jnp.float32)  # MXU hot path
    acc_ref[...] = h + y + b_ref[0]

    @pl.when(r == pl.num_programs(1) - 1)
    def _finalize():
        o_ref[...] = acc_ref[...].astype(o_ref.dtype)


def _choose_lane_tile(n, c, itemsize, target=2048, vmem_budget=24 << 20):
    """Lane-tile width: multiple of 128, <= target, fits the VMEM budget
    (2x in + 2x out tiles + f32 accumulator, after reserving 2x the (C,C)
    weight buffer), and gives >=2 grid steps when possible so both v7x
    TensorCores get work."""
    per_lane = c * (4 * itemsize + 4)                  # 2x in, 2x out, f32 acc
    avail = max(vmem_budget - 2 * c * c * itemsize, per_lane * 128)
    fit = max(128, (avail // per_lane) // 128 * 128)
    n128 = ((n + 127) // 128) * 128                    # lane granularity
    tile = min(target, fit, n128)
    tile = max(128, (tile // 128) * 128)
    if n128 // tile < 2 and n128 >= 256:               # prefer >=2 parallel steps
        tile = max(128, ((n128 // 2) // 128) * 128)
    return tile


def res_blocks(x, ws, bs, *, lane_target=2048):
    """Apply R sequential ResidualBlocks (x + Conv1d_k1(x)) in one pallas_call.

    x:  (B, C, L)   activations
    ws: (R, C, C)   per-block Conv1d weights (out_ch, in_ch), kernel dim squeezed
    bs: (R, C)      per-block biases
    Returns (B, C, L).
    """
    B, C, L = x.shape
    R = ws.shape[0]
    assert ws.shape == (R, C, C) and bs.shape == (R, C)

    N = B * L
    itemsize = jnp.dtype(x.dtype).itemsize
    tile = _choose_lane_tile(N, C, itemsize, target=lane_target)
    n_tiles = pl.cdiv(N, tile)
    n_pad = n_tiles * tile

    # Collapse batch into the lane axis: (B, C, L) -> (C, B*L) lane-dense slab.
    x2 = jnp.transpose(x, (1, 0, 2)).reshape(C, N)
    if n_pad != N:
        x2 = jnp.pad(x2, ((0, 0), (0, n_pad - N)))
    b3 = bs.reshape(R, C, 1)

    # VMEM estimate: 2x in + 2x out tiles, f32 acc, 2x weight buffer, bias.
    est = (4 * itemsize + 4) * C * tile + 2 * itemsize * C * C + 8 * C
    vmem_limit = int(min(max(2 * est, 4 << 20), 64 << 20))

    out = pl.pallas_call(
        _res_stack_kernel,
        out_shape=jax.ShapeDtypeStruct((C, n_pad), x.dtype),
        grid_spec=pltpu.PrefetchScalarGridSpec(
            num_scalar_prefetch=0,
            grid=(n_tiles, R),
            in_specs=[
                pl.BlockSpec((C, tile), lambda i, r: (0, i)),     # x: fetched once per lane tile
                pl.BlockSpec((1, C, C), lambda i, r: (r, 0, 0)),  # W_r: streamed, double-buffered
                pl.BlockSpec((1, C, 1), lambda i, r: (r, 0, 0)),  # b_r
            ],
            out_specs=pl.BlockSpec((C, tile), lambda i, r: (0, i)),
            scratch_shapes=[pltpu.VMEM((C, tile), jnp.float32)],
        ),
        compiler_params=pltpu.CompilerParams(
            dimension_semantics=("parallel", "arbitrary"),
            vmem_limit_bytes=vmem_limit,
        ),
    )(x2, ws, b3)

    out = out[:, :N].reshape(C, B, L)
    return jnp.transpose(out, (1, 0, 2))


def residual_block(x, w, b, **kw):
    """Single ResidualBlock: x + Conv1d_k1(x). w: (C, C), b: (C,)."""
    return res_blocks(x, w[None], b[None], **kw)


def res_blocks_ref(x, ws, bs):
    # Pure-JAX reference: R sequential (h + conv1d_k1(h)) blocks.
    h = x
    for r in range(ws.shape[0]):
        y = jnp.einsum("oc,bcl->bol", ws[r], h,
                       precision=jax.lax.Precision.HIGHEST)
        h = h + y + bs[r][None, :, None]
    return h


if __name__ == "__main__":
    # Match the in-kernel f32 MXU matmul precision in the XLA-side reference.
    jax.config.update("jax_default_matmul_precision", "highest")

    # Small shapes consistent with the res_blocks stage: 9 residual blocks,
    # batch 2; C stands in for num_features*16 (1024 in production).
    B, C, L, R = 2, 32, 128, 9   # lane axis flattens to B*L = 256 -> 2 tiles of 128

    key = jax.random.PRNGKey(0)
    kx, kw, kb = jax.random.split(key, 3)

    # PyTorch Conv1d default init: uniform(-1/sqrt(fan_in), 1/sqrt(fan_in)),
    # fan_in = C * kernel_size = C.
    bound = 1.0 / jnp.sqrt(jnp.float32(C))
    ws = jax.random.uniform(kw, (R, C, C), jnp.float32, -bound, bound)
    bs = jax.random.uniform(kb, (R, C), jnp.float32, -bound, bound)
    x = jax.random.normal(kx, (B, C, L), jnp.float32)

    out = res_blocks(x, ws, bs)
    jax.block_until_ready(out)

    ref = res_blocks_ref(x, ws, bs)
    assert out.shape == (B, C, L)
    max_err = float(jnp.max(jnp.abs(out - ref)))
    assert jnp.allclose(out, ref, atol=1e-3, rtol=1e-3), max_err

    print("KERNEL_OK")
</pallas_src>

<mosaic_0001>
module attributes {stable_mosaic.version = 11 : i64} {
  func.func @_res_stack_kernel(%arg0: i32, %arg1: i32, %arg2: memref<32x128xf32, #tpu.memory_space<vmem>>, %arg3: memref<1x32x32xf32, #tpu.memory_space<vmem>>, %arg4: memref<1x32x1xf32, #tpu.memory_space<vmem>>, %arg5: memref<32x128xf32, #tpu.memory_space<vmem>>, %arg6: memref<32x128xf32, #tpu.memory_space<vmem>>) attributes {dimension_semantics = [#tpu.dimension_semantics<parallel>, #tpu.dimension_semantics<arbitrary>], iteration_bounds = array<i64: 2, 9>, scalar_prefetch = 0 : i64, scratch_operands = 1 : i64, tpu.core_type = #tpu.core_type<tc>, window_params = [{transform_indices = @transform_0, window_bounds = array<i64: 32, 128>}, {transform_indices = @transform_1, window_bounds = array<i64: 1, 32, 32>}, {transform_indices = @transform_2, window_bounds = array<i64: 1, 32, 1>}, {transform_indices = @transform_3, window_bounds = array<i64: 32, 128>}]} {
    %c0_i32 = arith.constant 0 : i32
    %0 = arith.cmpi eq, %arg1, %c0_i32 : i32
    %1 = arith.extui %0 : i1 to i32
    %c0_i32_0 = arith.constant 0 : i32
    %2 = arith.cmpi ne, %1, %c0_i32_0 : i32
    scf.if %2 {
      %c0_11 = arith.constant 0 : index
      %c0_12 = arith.constant 0 : index
      %16 = vector.load %arg2[%c0_11, %c0_12] : memref<32x128xf32, #tpu.memory_space<vmem>>, vector<32x128xf32>
      %c0_13 = arith.constant 0 : index
      %c0_14 = arith.constant 0 : index
      %17 = vector.load %arg6[%c0_13, %c0_14] : memref<32x128xf32, #tpu.memory_space<vmem>>, vector<32x128xf32>
      tpu.vector_store %arg6[%c0_13, %c0_14], %16 {strides = array<i32>} : memref<32x128xf32, #tpu.memory_space<vmem>>, vector<32x128xf32>,
    } else {
    }
    %c0 = arith.constant 0 : index
    %c0_1 = arith.constant 0 : index
    %3 = vector.load %arg6[%c0, %c0_1] : memref<32x128xf32, #tpu.memory_space<vmem>>, vector<32x128xf32>
    %c0_2 = arith.constant 0 : index
    %c0_3 = arith.constant 0 : index
    %c0_4 = arith.constant 0 : index
    %4 = vector.load %arg3[%c0_2, %c0_3, %c0_4] : memref<1x32x32xf32, #tpu.memory_space<vmem>>, vector<1x32x32xf32>
    %5 = vector.shape_cast %4 : vector<1x32x32xf32> to vector<32x32xf32>
    %cst = arith.constant dense<0.000000e+00> : vector<32x128xf32>
    %6 = tpu.matmul %5, %3, %cst {dimension_numbers = #tpu.dot_dimension_numbers<[1], [0], [0], [1], [0, 0, 1, 1], [], []>, precision = #tpu.contract_precision<fp32>} : vector<32x32xf32>, vector<32x128xf32>, vector<32x128xf32> -> vector<32x128xf32>
    %7 = arith.addf %3, %6 : vector<32x128xf32>
    %c0_5 = arith.constant 0 : index
    %c0_6 = arith.constant 0 : index
    %c0_7 = arith.constant 0 : index
    %8 = vector.load %arg4[%c0_5, %c0_6, %c0_7] : memref<1x32x1xf32, #tpu.memory_space<vmem>>, vector<1x32x1xf32>
    %9 = vector.shape_cast %8 : vector<1x32x1xf32> to vector<32x1xf32>
    %10 = vector.broadcast %9 : vector<32x1xf32> to vector<32x128xf32>
    %11 = arith.addf %7, %10 : vector<32x128xf32>
    %c0_8 = arith.constant 0 : index
    %c0_9 = arith.constant 0 : index
    %12 = vector.load %arg6[%c0_8, %c0_9] : memref<32x128xf32, #tpu.memory_space<vmem>>, vector<32x128xf32>
    tpu.vector_store %arg6[%c0_8, %c0_9], %11 {strides = array<i32>} : memref<32x128xf32, #tpu.memory_space<vmem>>, vector<32x128xf32>,
    %c8_i32 = arith.constant 8 : i32
    %13 = arith.cmpi eq, %arg1, %c8_i32 : i32
    %14 = arith.extui %13 : i1 to i32
    %c0_i32_10 = arith.constant 0 : i32
    %15 = arith.cmpi ne, %14, %c0_i32_10 : i32
    scf.if %15 {
      %c0_11 = arith.constant 0 : index
      %c0_12 = arith.constant 0 : index
      %16 = vector.load %arg6[%c0_11, %c0_12] : memref<32x128xf32, #tpu.memory_space<vmem>>, vector<32x128xf32>
      %c0_13 = arith.constant 0 : index
      %c0_14 = arith.constant 0 : index
      %17 = vector.load %arg5[%c0_13, %c0_14] : memref<32x128xf32, #tpu.memory_space<vmem>>, vector<32x128xf32>
      tpu.vector_store %arg5[%c0_13, %c0_14], %16 {strides = array<i32>} : memref<32x128xf32, #tpu.memory_space<vmem>>, vector<32x128xf32>,
    } else {
    }
    return
  }
  func.func @transform_0(%arg0: i32, %arg1: i32) -> (i32, i32) {
    %c0_i32 = arith.constant 0 : i32
    %c0_i32_0 = arith.constant 0 : i32
    return %c0_i32, %arg0 : i32, i32
  }
  func.func @transform_1(%arg0: i32, %arg1: i32) -> (i32, i32, i32) {
    %c0_i32 = arith.constant 0 : i32
    %c0_i32_0 = arith.constant 0 : i32
    %c0_i32_1 = arith.constant 0 : i32
    return %arg1, %c0_i32, %c0_i32_0 : i32, i32, i32
  }
  func.func @transform_2(%arg0: i32, %arg1: i32) -> (i32, i32, i32) {
    %c0_i32 = arith.constant 0 : i32
    %c0_i32_0 = arith.constant 0 : i32
    %c0_i32_1 = arith.constant 0 : i32
    return %arg1, %c0_i32, %c0_i32_0 : i32, i32, i32
  }
  func.func @transform_3(%arg0: i32, %arg1: i32) -> (i32, i32) {
    %c0_i32 = arith.constant 0 : i32
    %c0_i32_0 = arith.constant 0 : i32
    return %c0_i32, %arg0 : i32, i32
  }
}

</mosaic_0001>

<llo_original>
// kernel: tpu_custom_call.1
$region0: #{tpu_custom_call.1}
  #allocation0 [shape = 'u32[]', space=smem, size = 0x4, offset = 0x4, fixed_abs, tag = 'smem constant byte address 0x4 - core index']
  #allocation1 [shape = 'u32[72,128]{1,0:T(1,128)}', space=vmem, size = 0x9000, scoped, tag = 'internal scratch']
  #allocation2 [shape = 'f32[32,128]{1,0:T(8,128)}', space=vmem, size = 0x4000, scoped, tag = 'scratch operand']
  %s0 = inlined_call_operand.hbm [shape: f32[32,256], index: 0, kind: input, shape index: {}]
  %s1 = inlined_call_operand.vmem [shape: f32[9,32,32], index: 1, kind: input, shape index: {}]
  %s2 = inlined_call_operand.vmem [shape: f32[9,32,1], index: 2, kind: input, shape index: {}]
  %s3 = inlined_call_operand.hbm [shape: f32[32,256], index: 3, kind: output, shape index: {}]
  %s4 = sld [smem:[#allocation0]]
  $region57: #{tpu_custom_call.1} parent=0
    _
  %s6 = ssub.s32 1, %s4
  %s7 = scalar_select 0, %s6, %s4
  $region1: #{tpu_custom_call.1} parent=0
    #allocation3 [shape = 'u8[32768]{0}', space=vmem, size = 0x8000, scoped, tag = 'input window, operand 0']
    #allocation4 [shape = 's32[2]{0}', space=sflag, size = 0x8, scoped, tag = 'scoped memory for tpu_custom_call.1']
    #allocation5 [shape = 's32[2]{0}', space=sflag, size = 0x8, scoped, tag = 'scoped memory for tpu_custom_call.1']
    #allocation6 [shape = 'u8[32768]{0}', space=vmem, size = 0x8000, scoped, tag = 'output window, operand 0']
    %8 = vsyncpa [#allocation4], 0
    %s9 = scalar_lea.sflag [#allocation4], 1
    %10 = vsyncpa %s9, 0
    %11 = vsyncpa [#allocation5], 0
    %s12 = scalar_lea.sflag [#allocation5], 1
    %13 = vsyncpa %s12, 0
    loop: start=0, step=1, limit=20
    $region2: #{tpu_custom_call.1} parent=1 // loop_pre_header
      _
    $region3: #{tpu_custom_call.1} parent=1 // loop_header
      %s15 = sphi 0, %s19
      %p16 = scmp.ge.s32.totalorder %s15, 20
      %s22 = sphi 0, %s34
      %s23 = sphi 0, %s30
      %s24 = sphi 0, %s22
      %s25 = sphi 0, %s23
      %s26 = sphi 0, %s24
      %s27 = sphi 0, %s25
      %s37 = sphi 0, %s39
      %s40 = sphi 0, %s37
      %s41 = sphi 0, %s40
      %s57 = sphi 0, %s41
      %s63 = sphi 0, %s65
      %s66 = sphi 0, %s63
      %s67 = sphi 0, %s66
      %s83 = sphi 0, %s67
      %s89 = sphi 0, %s91
      %s92 = sphi 0, %s89
      %s93 = sphi 0, %s92
      %s109 = sphi 0, %s93
      %s115 = sphi 0, %s117
      %s118 = sphi 0, %s115
      %s119 = sphi 0, %s118
      %s135 = sphi 0, %s119
    $region4: #{tpu_custom_call.1} parent=1 // loop_header_branch
      %18 = sbr.rel (%p16) target = $region8
    $region5: #{tpu_custom_call.1} parent=1 // loop_body
      %s20 = ssub.s32 %s15, 1
      %s21 = ssub.s32 %s15, 2
      %s28 = sadd.s32 1, %s23
      %p29 = scmp.ge.s32.totalorder %s28, 9
      %s30 = scalar_select %p29, 0, %s28
      %s31 = sadd.s32 1, %s22
      %s32 = scalar_select %p29, %s31, %s22
      %p33 = scmp.ge.s32.totalorder %s32, 2
      %s34 = scalar_select %p33, 0, %s32
      %s35 = ssub.s32 %s22, %s34
      %p36 = scmp.eq.s32.totalorder %s35, 0
      %s38 = sadd.s32 %s37, 1
      %s39 = scalar_select %p36, %s37, %s38
      %p42 = pneg %p36
      %p43 = scmp.eq.s32.totalorder %s15, 17
      %p44 = por %p42, %p43
      %p45 = scmp.ne.s32.totalorder %s37, %s40
      %p46 = scmp.eq.s32.totalorder %s15, 0
      %p47 = por %p45, %p46
      %p48 = scmp.ne.s32.totalorder %s37, %s40
      %p49 = scmp.eq.s32.totalorder %s20, 17
      %p50 = por %p48, %p49
      %p51 = scmp.ne.s32.totalorder %s40, %s41
      %p52 = scmp.eq.s32.totalorder %s20, 0
      %p53 = por %p51, %p52
      %p54 = scmp.ne.s32.totalorder %s40, %s41
      %p55 = scmp.eq.s32.totalorder %s21, 17
      %p56 = por %p54, %p55
      %p58 = scmp.ne.s32.totalorder %s41, %s57
      %p59 = scmp.eq.s32.totalorder %s21, 0
      %p60 = por %p58, %p59
      %s61 = ssub.s32 %s23, %s30
      %p62 = scmp.eq.s32.totalorder %s61, 0
      %s64 = sadd.s32 %s63, 1
      %s65 = scalar_select %p62, %s63, %s64
      %p68 = pneg %p62
      %p69 = scmp.eq.s32.totalorder %s15, 17
      %p70 = por %p68, %p69
      %p71 = scmp.ne.s32.totalorder %s63, %s66
      %p72 = scmp.eq.s32.totalorder %s15, 0
      %p73 = por %p71, %p72
      %p74 = scmp.ne.s32.totalorder %s63, %s66
      %p75 = scmp.eq.s32.totalorder %s20, 17
      %p76 = por %p74, %p75
      %p77 = scmp.ne.s32.totalorder %s66, %s67
      %p78 = scmp.eq.s32.totalorder %s20, 0
      %p79 = por %p77, %p78
      %p80 = scmp.ne.s32.totalorder %s66, %s67
      %p81 = scmp.eq.s32.totalorder %s21, 17
      %p82 = por %p80, %p81
      %p84 = scmp.ne.s32.totalorder %s67, %s83
      %p85 = scmp.eq.s32.totalorder %s21, 0
      %p86 = por %p84, %p85
      %s87 = ssub.s32 %s23, %s30
      %p88 = scmp.eq.s32.totalorder %s87, 0
      %s90 = sadd.s32 %s89, 1
      %s91 = scalar_select %p88, %s89, %s90
      %p94 = pneg %p88
      %p95 = scmp.eq.s32.totalorder %s15, 17
      %p96 = por %p94, %p95
      %p97 = scmp.ne.s32.totalorder %s89, %s92
      %p98 = scmp.eq.s32.totalorder %s15, 0
      %p99 = por %p97, %p98
      %p100 = scmp.ne.s32.totalorder %s89, %s92
      %p101 = scmp.eq.s32.totalorder %s20, 17
      %p102 = por %p100, %p101
      %p103 = scmp.ne.s32.totalorder %s92, %s93
      %p104 = scmp.eq.s32.totalorder %s20, 0
      %p105 = por %p103, %p104
      %p106 = scmp.ne.s32.totalorder %s92, %s93
      %p107 = scmp.eq.s32.totalorder %s21, 17
      %p108 = por %p106, %p107
      %p110 = scmp.ne.s32.totalorder %s93, %s109
      %p111 = scmp.eq.s32.totalorder %s21, 0
      %p112 = por %p110, %p111
      %s113 = ssub.s32 %s22, %s34
      %p114 = scmp.eq.s32.totalorder %s113, 0
      %s116 = sadd.s32 %s115, 1
      %s117 = scalar_select %p114, %s115, %s116
      %p120 = pneg %p114
      %p121 = scmp.eq.s32.totalorder %s15, 17
      %p122 = por %p120, %p121
      %p123 = scmp.ne.s32.totalorder %s115, %s118
      %p124 = scmp.eq.s32.totalorder %s15, 0
      %p125 = por %p123, %p124
      %p126 = scmp.ne.s32.totalorder %s115, %s118
      %p127 = scmp.eq.s32.totalorder %s20, 17
      %p128 = por %p126, %p127
      %p129 = scmp.ne.s32.totalorder %s118, %s119
      %p130 = scmp.eq.s32.totalorder %s20, 0
      %p131 = por %p129, %p130
      %p132 = scmp.ne.s32.totalorder %s118, %s119
      %p133 = scmp.eq.s32.totalorder %s21, 17
      %p134 = por %p132, %p133
      %p136 = scmp.ne.s32.totalorder %s119, %s135
      %p137 = scmp.eq.s32.totalorder %s21, 0
      %p138 = por %p136, %p137
      %p139 = scmp.le.s32.totalorder 1, %s15
      %p140 = scmp.lt.s32.totalorder %s15, 19
      %p141 = pnand %p139, %p140
      %p142 = pneg %p141
      // Predicated region
      $region9: #{tpu_custom_call.1} parent=5 // pred_check
        _
      $region10: #{tpu_custom_call.1} parent=5 // pred_check_branch
        %144 = sbr.rel (%p141) target = $region12
      $region11: #{tpu_custom_call.1} parent=5 // pred_region
        %s145 = ssub.s32 %s15, 1
      $region12: #{tpu_custom_call.1} parent=5 // pred_fallthru
        _
      %p146 = scmp.lt.s32.totalorder %s15, 18
      // Predicated region
      $region13: #{tpu_custom_call.1} parent=5 // pred_check
        %p147 = pneg %p146
      $region14: #{tpu_custom_call.1} parent=5 // pred_check_branch
        %149 = sbr.rel (%p147) target = $region16
      $region15: #{tpu_custom_call.1} parent=5 // pred_region
        // Predicated region
        $region17: #{tpu_custom_call.1} parent=15 // pred_check
          %p150 = pneg %p47
        $region18: #{tpu_custom_call.1} parent=15 // pred_check_branch
          %152 = sbr.rel (%p150) target = $region20
        $region19: #{tpu_custom_call.1} parent=15 // pred_region
          %s153 = sand.u32 %s37, 1
          %s154 = scalar_lea.sflag [#allocation4], %s153
          %s155 = sand.u32 %s37, 1
          %s156 = smul.addr %s155, 32
          %s157 = scalar_lea.vmem [#allocation3], %s156
          %159 = vsyncadd %s154, 0
          %s160 = smul.addr %s22, 8
          %s161 = scalar_lea.hbm %s0, %s160
          %s162 = sshll.u32 %s161, 4
          %s163 = int_to_ptr.hbm [resolvable:$true] %s162
          %s164 = sshll.u32 %s157, 4
          %s165 = int_to_ptr.vmem [resolvable:$true] %s164
          %170 = dma.hbm_to_vmem [thread:$0]  %s163, 512, %s165, %s154, 256, 128, 8
        $region20: #{tpu_custom_call.1} parent=15 // pred_fallthru
          _
        // Predicated region
        $region21: #{tpu_custom_call.1} parent=15 // pred_check
          %p171 = pneg %p73
        $region22: #{tpu_custom_call.1} parent=15 // pred_check_branch
          %173 = sbr.rel (%p171) target = $region24
        $region23: #{tpu_custom_call.1} parent=15 // pred_region
          %p174 = scmp.lt.s32.totalorder %s23, 8
          %s175 = scalar_select %p174, %s23, 8
          %s176 = smul.addr %s175, 4
          %s177 = smul.addr %s176, 8
          %s178 = scalar_lea.vmem %s1, %s177
        $region24: #{tpu_custom_call.1} parent=15 // pred_fallthru
          _
        // Predicated region
        $region25: #{tpu_custom_call.1} parent=15 // pred_check
          %p179 = pneg %p99
        $region26: #{tpu_custom_call.1} parent=15 // pred_check_branch
          %181 = sbr.rel (%p179) target = $region28
        $region27: #{tpu_custom_call.1} parent=15 // pred_region
          %p182 = scmp.lt.s32.totalorder %s23, 8
          %s183 = scalar_select %p182, %s23, 8
          %s184 = smul.addr %s183, 4
          %s185 = smul.addr %s184, 8
          %s186 = scalar_lea.vmem %s2, %s185
        $region28: #{tpu_custom_call.1} parent=15 // pred_fallthru
          _
      $region16: #{tpu_custom_call.1} parent=5 // pred_fallthru
        _
      %p187 = scmp.le.s32.totalorder 1, %s15
      %p188 = scmp.lt.s32.totalorder %s15, 19
      %p189 = pnand %p187, %p188
      %p190 = pneg %p189
      // Predicated region
      $region29: #{tpu_custom_call.1} parent=5 // pred_check
        _
      $region30: #{tpu_custom_call.1} parent=5 // pred_check_branch
        %192 = sbr.rel (%p189) target = $region32
      $region31: #{tpu_custom_call.1} parent=5 // pred_region
        %s193 = ssub.s32 %s15, 1
        %s194 = sand.u32 %s40, 1
        %s195 = scalar_lea.sflag [#allocation4], %s194
        %s196 = sand.u32 %s40, 1
        %s197 = smul.addr %s196, 32
        %s198 = scalar_lea.vmem [#allocation3], %s197
        // Predicated region
        $region33: #{tpu_custom_call.1} parent=31 // pred_check
          %p199 = pneg %p53
        $region34: #{tpu_custom_call.1} parent=31 // pred_check_branch
          %201 = sbr.rel (%p199) target = $region36
        $region35: #{tpu_custom_call.1} parent=31 // pred_region
          %203 = dma.done %s195, 512
        $region36: #{tpu_custom_call.1} parent=31 // pred_fallthru
          _
        %s204 = sand.u32 %s40, 1
        %s205 = scalar_lea.sflag [#allocation4], %s204
        %s206 = sand.u32 %s40, 1
        %s207 = smul.addr %s206, 32
        %s208 = scalar_lea.vmem [#allocation3], %s207
        %p209 = pneg %p53
        %p210 = pneg %p50
        %p211 = scmp.lt.s32.totalorder %s25, 8
        %s212 = scalar_select %p211, %s25, 8
        %s213 = smul.addr %s212, 4
        %s214 = smul.addr %s213, 8
        %s215 = scalar_lea.vmem %s1, %s214
        %p216 = pneg %p79
        %p217 = pneg %p76
        %p218 = scmp.lt.s32.totalorder %s25, 8
        %s219 = scalar_select %p218, %s25, 8
        %s220 = smul.addr %s219, 4
        %s221 = smul.addr %s220, 8
        %s222 = scalar_lea.vmem %s2, %s221
        %p223 = pneg %p105
        %p224 = pneg %p102
        %p225 = pneg %p131
        %p226 = pneg %p128
        %s227 = sand.u32 %s118, 1
        %s228 = scalar_lea.sflag [#allocation5], %s227
        %s229 = sand.u32 %s118, 1
        %s230 = smul.addr %s229, 32
        %s231 = scalar_lea.vmem [#allocation6], %s230
        %p232 = scmp.lt.s32.totalorder %s25, 8
        %s233 = scalar_select %p232, %s25, 8
        %s234 = smul.addr %s233, 4
        %s235 = smul.addr %s234, 8
        %s236 = scalar_lea.vmem %s1, %s235
        %p237 = scmp.lt.s32.totalorder %s25, 8
        %s238 = scalar_select %p237, %s25, 8
        %s239 = smul.addr %s238, 4
        %s240 = smul.addr %s239, 8
        %s241 = scalar_lea.vmem %s2, %s240
        %p242 = scmp.eq.s32.totalorder %s25, 0
        // Predicated region
        $region37: #{tpu_custom_call.1} parent=31 // pred_check
          %p243 = pneg %p242
        $region38: #{tpu_custom_call.1} parent=31 // pred_check_branch
          %245 = sbr.rel (%p243) target = $region40
        $region39: #{tpu_custom_call.1} parent=31 // pred_region
          %v246 = vld [vmem:[%s198] sm:$0xff]
          %v247 = vld [vmem:[%s198 + $0x8] sm:$0xff]
          %v248 = vld [vmem:[%s198 + $0x10] sm:$0xff]
          %v249 = vld [vmem:[%s198 + $0x18] sm:$0xff]
          %250 = vst [vmem:[#allocation2] sm:$0xff] %v246
          %251 = vst [vmem:[#allocation2 + $0x8] sm:$0xff] %v247
          %252 = vst [vmem:[#allocation2 + $0x10] sm:$0xff] %v248
          %253 = vst [vmem:[#allocation2 + $0x18] sm:$0xff] %v249
        $region40: #{tpu_custom_call.1} parent=31 // pred_fallthru
          _
        %v254 = vld [vmem:[#allocation2] sm:$0xff]
        %v255 = vld [vmem:[#allocation2 + $0x8] sm:$0xff]
        %v256 = vld [vmem:[#allocation2 + $0x10] sm:$0xff]
        %v257 = vld [vmem:[#allocation2 + $0x18] sm:$0xff]
        %v258 = vld [vmem:[%s236] sm:$0xff]
        %v259 = vld [vmem:[%s236 + $0x8] sm:$0xff]
        %v260 = vld [vmem:[%s236 + $0x10] sm:$0xff]
        %v261 = vld [vmem:[%s236 + $0x18] sm:$0xff]
        %vm262 = vcmask 261120
        %v264 = vsel %vm262, %v258, 0
        %v267 = vsel %vm262, %v259, 0
        %v270 = vsel %vm262, %v260, 0
        %v273 = vsel %vm262, %v261, 0
        %275 = vmatpush.msra.mxu0 0.0
        %276 = vmatpush.msra.mxu0 0.0
        %277 = vmatpush.msra.mxu0 0.0
        %278 = vmatpush.msra.mxu0 0.0
        %279 = vmatpush.msra.mxu0 0.0
        %280 = vmatpush.msra.mxu0 0.0
        %281 = vmatpush.msra.mxu0 0.0
        %282 = vmatpush.msra.mxu0 0.0
        %283 = vmatpush.msra.mxu0 0.0
        %284 = vmatpush.msra.mxu0 0.0
        %285 = vmatpush.msra.mxu0 0.0
        %286 = vmatpush.msra.mxu0 0.0
        %v287 = vand.u32 %v257, 4294901760
        %288 = vmatpush.msra.mxu0 %v287
        %v289 = vand.u32 %v256, 4294901760
        %290 = vmatpush.msra.mxu0 %v289
        %v291 = vand.u32 %v255, 4294901760
        %292 = vmatpush.msra.mxu0 %v291
        %v293 = vand.u32 %v254, 4294901760
        %294 = vmatpush.msra.mxu0 %v293
        %v295 = vand.u32 %v264, 4294901760
        %v296 = vsub.f32 %v264, %v295
        %v297 = vand.u32 %v296, 4294901760
        %v298 = vsub.f32 %v296, %v297
        %v299 = vand.u32 %v298, 4294901760
        %300 = vmatmul.f32.gmra.mxu0 %v299
        %v301 = vpop.f32.mrf.mxu0
        %v302 = vadd.f32 0.0, %v301
        %v303 = vand.u32 %v267, 4294901760
        %v304 = vsub.f32 %v267, %v303
        %v305 = vand.u32 %v304, 4294901760
        %v306 = vsub.f32 %v304, %v305
        %v307 = vand.u32 %v306, 4294901760
        %308 = vmatmul.f32.gmra.mxu0 %v307
        %v309 = vpop.f32.mrf.mxu0
        %v310 = vadd.f32 0.0, %v309
        %v311 = vand.u32 %v270, 4294901760
        %v312 = vsub.f32 %v270, %v311
        %v313 = vand.u32 %v312, 4294901760
        %v314 = vsub.f32 %v312, %v313
        %v315 = vand.u32 %v314, 4294901760
        %316 = vmatmul.f32.gmra.mxu0 %v315
        %v317 = vpop.f32.mrf.mxu0
        %v318 = vadd.f32 0.0, %v317
        %v319 = vand.u32 %v273, 4294901760
        %v320 = vsub.f32 %v273, %v319
        %v321 = vand.u32 %v320, 4294901760
        %v322 = vsub.f32 %v320, %v321
        %v323 = vand.u32 %v322, 4294901760
        %324 = vmatmul.f32.gmra.mxu0 %v323
        %v325 = vpop.f32.mrf.mxu0
        %v326 = vadd.f32 0.0, %v325
        %327 = vdwg.mxu0
        %328 = vmatpush.msra.mxu0 0.0
        %329 = vmatpush.msra.mxu0 0.0
        %330 = vmatpush.msra.mxu0 0.0
        %331 = vmatpush.msra.mxu0 0.0
        %332 = vmatpush.msra.mxu0 0.0
        %333 = vmatpush.msra.mxu0 0.0
        %334 = vmatpush.msra.mxu0 0.0
        %335 = vmatpush.msra.mxu0 0.0
        %336 = vmatpush.msra.mxu0 0.0
        %337 = vmatpush.msra.mxu0 0.0
        %338 = vmatpush.msra.mxu0 0.0
        %339 = vmatpush.msra.mxu0 0.0
        %v340 = vand.u32 %v257, 4294901760
        %v341 = vsub.f32 %v257, %v340
        %v342 = vand.u32 %v341, 4294901760
        %v343 = vsub.f32 %v341, %v342
        %v344 = vand.u32 %v343, 4294901760
        %345 = vmatpush.msra.mxu0 %v344
        %v346 = vand.u32 %v256, 4294901760
        %v347 = vsub.f32 %v256, %v346
        %v348 = vand.u32 %v347, 4294901760
        %v349 = vsub.f32 %v347, %v348
        %v350 = vand.u32 %v349, 4294901760
        %351 = vmatpush.msra.mxu0 %v350
        %v352 = vand.u32 %v255, 4294901760
        %v353 = vsub.f32 %v255, %v352
        %v354 = vand.u32 %v353, 4294901760
        %v355 = vsub.f32 %v353, %v354
        %v356 = vand.u32 %v355, 4294901760
        %357 = vmatpush.msra.mxu0 %v356
        %v358 = vand.u32 %v254, 4294901760
        %v359 = vsub.f32 %v254, %v358
        %v360 = vand.u32 %v359, 4294901760
        %v361 = vsub.f32 %v359, %v360
        %v362 = vand.u32 %v361, 4294901760
        %363 = vmatpush.msra.mxu0 %v362
        %v364 = vand.u32 %v264, 4294901760
        %365 = vmatmul.f32.gmra.mxu0 %v364
        %v366 = vpop.f32.mrf.mxu0
        %v367 = vadd.f32 %v302, %v366
        %v368 = vand.u32 %v267, 4294901760
        %369 = vmatmul.f32.gmra.mxu0 %v368
        %v370 = vpop.f32.mrf.mxu0
        %v371 = vadd.f32 %v310, %v370
        %v372 = vand.u32 %v270, 4294901760
        %373 = vmatmul.f32.gmra.mxu0 %v372
        %v374 = vpop.f32.mrf.mxu0
        %v375 = vadd.f32 %v318, %v374
        %v376 = vand.u32 %v273, 4294901760
        %377 = vmatmul.f32.gmra.mxu0 %v376
        %v378 = vpop.f32.mrf.mxu0
        %v379 = vadd.f32 %v326, %v378
        %380 = vdwg.mxu0
        %381 = vmatpush.msra.mxu0 0.0
        %382 = vmatpush.msra.mxu0 0.0
        %383 = vmatpush.msra.mxu0 0.0
        %384 = vmatpush.msra.mxu0 0.0
        %385 = vmatpush.msra.mxu0 0.0
        %386 = vmatpush.msra.mxu0 0.0
        %387 = vmatpush.msra.mxu0 0.0
        %388 = vmatpush.msra.mxu0 0.0
        %389 = vmatpush.msra.mxu0 0.0
        %390 = vmatpush.msra.mxu0 0.0
        %391 = vmatpush.msra.mxu0 0.0
        %392 = vmatpush.msra.mxu0 0.0
        %v393 = vand.u32 %v257, 4294901760
        %v394 = vsub.f32 %v257, %v393
        %395 = vmatpush.msra.mxu0 %v394
        %v396 = vand.u32 %v256, 4294901760
        %v397 = vsub.f32 %v256, %v396
        %398 = vmatpush.msra.mxu0 %v397
        %v399 = vand.u32 %v255, 4294901760
        %v400 = vsub.f32 %v255, %v399
        %401 = vmatpush.msra.mxu0 %v400
        %v402 = vand.u32 %v254, 4294901760
        %v403 = vsub.f32 %v254, %v402
        %404 = vmatpush.msra.mxu0 %v403
        %v405 = vand.u32 %v264, 4294901760
        %v406 = vsub.f32 %v264, %v405
        %407 = vmatmul.f32.gmra.mxu0 %v406
        %v408 = vpop.f32.mrf.mxu0
        %v409 = vadd.f32 %v367, %v408
        %v410 = vand.u32 %v267, 4294901760
        %v411 = vsub.f32 %v267, %v410
        %412 = vmatmul.f32.gmra.mxu0 %v411
        %v413 = vpop.f32.mrf.mxu0
        %v414 = vadd.f32 %v371, %v413
        %v415 = vand.u32 %v270, 4294901760
        %v416 = vsub.f32 %v270, %v415
        %417 = vmatmul.f32.gmra.mxu0 %v416
        %v418 = vpop.f32.mrf.mxu0
        %v419 = vadd.f32 %v375, %v418
        %v420 = vand.u32 %v273, 4294901760
        %v421 = vsub.f32 %v273, %v420
        %422 = vmatmul.f32.gmra.mxu0 %v421
        %v423 = vpop.f32.mrf.mxu0
        %v424 = vadd.f32 %v379, %v423
        %425 = vdwg.mxu0
        %426 = vmatpush.msra.mxu0 0.0
        %427 = vmatpush.msra.mxu0 0.0
        %428 = vmatpush.msra.mxu0 0.0
        %429 = vmatpush.msra.mxu0 0.0
        %430 = vmatpush.msra.mxu0 0.0
        %431 = vmatpush.msra.mxu0 0.0
        %432 = vmatpush.msra.mxu0 0.0
        %433 = vmatpush.msra.mxu0 0.0
        %434 = vmatpush.msra.mxu0 0.0
        %435 = vmatpush.msra.mxu0 0.0
        %436 = vmatpush.msra.mxu0 0.0
        %437 = vmatpush.msra.mxu0 0.0
        %v438 = vand.u32 %v257, 4294901760
        %439 = vmatpush.msra.mxu0 %v438
        %v440 = vand.u32 %v256, 4294901760
        %441 = vmatpush.msra.mxu0 %v440
        %v442 = vand.u32 %v255, 4294901760
        %443 = vmatpush.msra.mxu0 %v442
        %v444 = vand.u32 %v254, 4294901760
        %445 = vmatpush.msra.mxu0 %v444
        %v446 = vand.u32 %v264, 4294901760
        %v447 = vsub.f32 %v264, %v446
        %v448 = vand.u32 %v447, 4294901760
        %449 = vmatmul.f32.gmra.mxu0 %v448
        %v450 = vpop.f32.mrf.mxu0
        %v451 = vadd.f32 %v409, %v450
        %v452 = vand.u32 %v267, 4294901760
        %v453 = vsub.f32 %v267, %v452
        %v454 = vand.u32 %v453, 4294901760
        %455 = vmatmul.f32.gmra.mxu0 %v454
        %v456 = vpop.f32.mrf.mxu0
        %v457 = vadd.f32 %v414, %v456
        %v458 = vand.u32 %v270, 4294901760
        %v459 = vsub.f32 %v270, %v458
        %v460 = vand.u32 %v459, 4294901760
        %461 = vmatmul.f32.gmra.mxu0 %v460
        %v462 = vpop.f32.mrf.mxu0
        %v463 = vadd.f32 %v419, %v462
        %v464 = vand.u32 %v273, 4294901760
        %v465 = vsub.f32 %v273, %v464
        %v466 = vand.u32 %v465, 4294901760
        %467 = vmatmul.f32.gmra.mxu0 %v466
        %v468 = vpop.f32.mrf.mxu0
        %v469 = vadd.f32 %v424, %v468
        %470 = vdwg.mxu0
        %471 = vmatpush.msra.mxu0 0.0
        %472 = vmatpush.msra.mxu0 0.0
        %473 = vmatpush.msra.mxu0 0.0
        %474 = vmatpush.msra.mxu0 0.0
        %475 = vmatpush.msra.mxu0 0.0
        %476 = vmatpush.msra.mxu0 0.0
        %477 = vmatpush.msra.mxu0 0.0
        %478 = vmatpush.msra.mxu0 0.0
        %479 = vmatpush.msra.mxu0 0.0
        %480 = vmatpush.msra.mxu0 0.0
        %481 = vmatpush.msra.mxu0 0.0
        %482 = vmatpush.msra.mxu0 0.0
        %v483 = vand.u32 %v257, 4294901760
        %v484 = vsub.f32 %v257, %v483
        %v485 = vand.u32 %v484, 4294901760
        %486 = vmatpush.msra.mxu0 %v485
        %v487 = vand.u32 %v256, 4294901760
        %v488 = vsub.f32 %v256, %v487
        %v489 = vand.u32 %v488, 4294901760
        %490 = vmatpush.msra.mxu0 %v489
        %v491 = vand.u32 %v255, 4294901760
        %v492 = vsub.f32 %v255, %v491
        %v493 = vand.u32 %v492, 4294901760
        %494 = vmatpush.msra.mxu0 %v493
        %v495 = vand.u32 %v254, 4294901760
        %v496 = vsub.f32 %v254, %v495
        %v497 = vand.u32 %v496, 4294901760
        %498 = vmatpush.msra.mxu0 %v497
        %v499 = vand.u32 %v264, 4294901760
        %500 = vmatmul.f32.gmra.mxu0 %v499
        %v501 = vpop.f32.mrf.mxu0
        %v502 = vadd.f32 %v451, %v501
        %v503 = vand.u32 %v267, 4294901760
        %504 = vmatmul.f32.gmra.mxu0 %v503
        %v505 = vpop.f32.mrf.mxu0
        %v506 = vadd.f32 %v457, %v505
        %v507 = vand.u32 %v270, 4294901760
        %508 = vmatmul.f32.gmra.mxu0 %v507
        %v509 = vpop.f32.mrf.mxu0
        %v510 = vadd.f32 %v463, %v509
        %v511 = vand.u32 %v273, 4294901760
        %512 = vmatmul.f32.gmra.mxu0 %v511
        %v513 = vpop.f32.mrf.mxu0
        %v514 = vadd.f32 %v469, %v513
        %515 = vdwg.mxu0
        %516 = vmatpush.msra.mxu0 0.0
        %517 = vmatpush.msra.mxu0 0.0
        %518 = vmatpush.msra.mxu0 0.0
        %519 = vmatpush.msra.mxu0 0.0
        %520 = vmatpush.msra.mxu0 0.0
        %521 = vmatpush.msra.mxu0 0.0
        %522 = vmatpush.msra.mxu0 0.0
        %523 = vmatpush.msra.mxu0 0.0
        %524 = vmatpush.msra.mxu0 0.0
        %525 = vmatpush.msra.mxu0 0.0
        %526 = vmatpush.msra.mxu0 0.0
        %527 = vmatpush.msra.mxu0 0.0
        %v528 = vand.u32 %v257, 4294901760
        %529 = vmatpush.msra.mxu0 %v528
        %v530 = vand.u32 %v256, 4294901760
        %531 = vmatpush.msra.mxu0 %v530
        %v532 = vand.u32 %v255, 4294901760
        %533 = vmatpush.msra.mxu0 %v532
        %v534 = vand.u32 %v254, 4294901760
        %535 = vmatpush.msra.mxu0 %v534
        %v536 = vand.u32 %v264, 4294901760
        %537 = vmatmul.f32.gmra.mxu0 %v536
        %v538 = vpop.f32.mrf.mxu0
        %v539 = vadd.f32 %v502, %v538
        %v540 = vand.u32 %v267, 4294901760
        %541 = vmatmul.f32.gmra.mxu0 %v540
        %v542 = vpop.f32.mrf.mxu0
        %v543 = vadd.f32 %v506, %v542
        %v544 = vand.u32 %v270, 4294901760
        %545 = vmatmul.f32.gmra.mxu0 %v544
        %v546 = vpop.f32.mrf.mxu0
        %v547 = vadd.f32 %v510, %v546
        %v548 = vand.u32 %v273, 4294901760
        %549 = vmatmul.f32.gmra.mxu0 %v548
        %v550 = vpop.f32.mrf.mxu0
        %v551 = vadd.f32 %v514, %v550
        %552 = vdwg.mxu0
        %v553 = vadd.f32 %v254, %v539
        %v554 = vadd.f32 %v255, %v543
        %v555 = vadd.f32 %v256, %v547
        %v556 = vadd.f32 %v257, %v551
        %v557 = vld [vmem:[%s241] sm:$0xff]
        %v558 = vld [vmem:[%s241 + $0x8] sm:$0xff]
        %v559 = vld [vmem:[%s241 + $0x10] sm:$0xff]
        %v560 = vld [vmem:[%s241 + $0x18] sm:$0xff]
        %562 = vset.pattern.permute.xlu0 0
        %563 = vperm.xlu0 %562, %v557
        %v564 = vpop.permute.xlu0 %563
        %567 = vset.pattern.permute.xlu0 0
        %568 = vperm.xlu0 %567, %v558
        %v569 = vpop.permute.xlu0 %568
        %572 = vset.pattern.permute.xlu0 0
        %573 = vperm.xlu0 %572, %v559
        %v574 = vpop.permute.xlu0 %573
        %577 = vset.pattern.permute.xlu0 0
        %578 = vperm.xlu0 %577, %v560
        %v579 = vpop.permute.xlu0 %578
        %v581 = vadd.f32 %v553, %v564
        %v582 = vadd.f32 %v554, %v569
        %v583 = vadd.f32 %v555, %v574
        %v584 = vadd.f32 %v556, %v579
        %585 = vst [vmem:[#allocation2] sm:$0xff] %v581
        %586 = vst [vmem:[#allocation2 + $0x8] sm:$0xff] %v582
        %587 = vst [vmem:[#allocation2 + $0x10] sm:$0xff] %v583
        %588 = vst [vmem:[#allocation2 + $0x18] sm:$0xff] %v584
        %p589 = scmp.eq.s32.totalorder %s25, 8
        // Predicated region
        $region41: #{tpu_custom_call.1} parent=31 // pred_check
          %p590 = pneg %p589
        $region42: #{tpu_custom_call.1} parent=31 // pred_check_branch
          %592 = sbr.rel (%p590) target = $region44
        $region43: #{tpu_custom_call.1} parent=31 // pred_region
          %v593 = vld [vmem:[#allocation2] sm:$0xff]
          %v594 = vld [vmem:[#allocation2 + $0x8] sm:$0xff]
          %v595 = vld [vmem:[#allocation2 + $0x10] sm:$0xff]
          %v596 = vld [vmem:[#allocation2 + $0x18] sm:$0xff]
          %597 = vst [vmem:[%s231] sm:$0xff] %v593
          %598 = vst [vmem:[%s231 + $0x8] sm:$0xff] %v594
          %599 = vst [vmem:[%s231 + $0x10] sm:$0xff] %v595
          %600 = vst [vmem:[%s231 + $0x18] sm:$0xff] %v596
        $region44: #{tpu_custom_call.1} parent=31 // pred_fallthru
          _
        %s601 = sand.u32 %s118, 1
        %s602 = scalar_lea.sflag [#allocation5], %s601
        %s603 = sand.u32 %s118, 1
        %s604 = smul.addr %s603, 32
        %s605 = scalar_lea.vmem [#allocation6], %s604
        // Predicated region
        $region45: #{tpu_custom_call.1} parent=31 // pred_check
          %p606 = pneg %p128
        $region46: #{tpu_custom_call.1} parent=31 // pred_check_branch
          %608 = sbr.rel (%p606) target = $region48
        $region47: #{tpu_custom_call.1} parent=31 // pred_region
          %610 = vsyncadd %s602, 0
          %s611 = smul.addr %s24, 8
          %s612 = scalar_lea.hbm %s3, %s611
          %s613 = sshll.u32 %s605, 4
          %s614 = int_to_ptr.vmem [resolvable:$true] %s613
          %s615 = sshll.u32 %s612, 4
          %s616 = int_to_ptr.hbm [resolvable:$true] %s615
          %621 = dma.vmem_to_hbm [thread:$0]  %s614, 512, %s616, %s602, 128, 256, 8
        $region48: #{tpu_custom_call.1} parent=31 // pred_fallthru
          _
      $region32: #{tpu_custom_call.1} parent=5 // pred_fallthru
        _
      %p622 = scmp.le.s32.totalorder 2, %s15
      // Predicated region
      $region49: #{tpu_custom_call.1} parent=5 // pred_check
        %p623 = pneg %p622
      $region50: #{tpu_custom_call.1} parent=5 // pred_check_branch
        %625 = sbr.rel (%p623) target = $region52
      $region51: #{tpu_custom_call.1} parent=5 // pred_region
        %s626 = ssub.s32 %s15, 2
        // Predicated region
        $region53: #{tpu_custom_call.1} parent=51 // pred_check
          %p627 = pneg %p134
        $region54: #{tpu_custom_call.1} parent=51 // pred_check_branch
          %629 = sbr.rel (%p627) target = $region56
        $region55: #{tpu_custom_call.1} parent=51 // pred_region
          %s630 = sand.u32 %s119, 1
          %s631 = scalar_lea.sflag [#allocation5], %s630
          %s632 = sand.u32 %s119, 1
          %s633 = smul.addr %s632, 32
          %s634 = scalar_lea.vmem [#allocation6], %s633
          %636 = dma.done %s631, 512
        $region56: #{tpu_custom_call.1} parent=51 // pred_fallthru
          _
      $region52: #{tpu_custom_call.1} parent=5 // pred_fallthru
        _
    $region6: #{tpu_custom_call.1} parent=1 // loop_footer
      %s19 = sadd.s32 1, %s15
    $region7: #{tpu_custom_call.1} parent=1 // loop_footer_branch
      %14 = sbr.rel target = $region3
    $region8: #{tpu_custom_call.1} parent=1 // loop_exit
      _
    %637 = vsyncpa [#allocation4], 1
    %s638 = scalar_lea.sflag [#allocation4], 1
    %639 = vsyncpa %s638, 1
    %640 = vsyncpa [#allocation5], 1
    %s641 = scalar_lea.sflag [#allocation5], 1
    %642 = vsyncpa %s641, 1

</llo_original>
